<compile_context>
chip_gen: v7x
topology: tpu7x:2x2x1
jax: 0.10.0
libtpu: 0.0.40
codegen_flags: <defaults>
</compile_context>

<pallas_src>
import functools
import math

import jax
import jax.numpy as jnp
import numpy as np
from jax.experimental import pallas as pl
from jax.experimental.pallas import tpu as pltpu


# ---------------------------------------------------------------------------
# Kernel
# ---------------------------------------------------------------------------
def _attn_kernel(x_ref, wqkv_ref, wo_ref, mask_ref, o_ref,
                 *, batch, seq_len, num_heads, head_dim):
    B, L, H, Hd = batch, seq_len, num_heads, head_dim
    G = H * B                                             # head-batch axis

    x = x_ref[...]                                        # (B*L, D) bf16

    # ---- fused QKV projection: ONE 2-D MXU contraction --------------------
    # Column layout (packed in wrapper): [Q heads | K heads | V heads],
    # head-major (Hd columns per head); scale already folded into Q columns.
    qkv = jnp.dot(x, wqkv_ref[...],
                  preferred_element_type=jnp.float32)     # (B*L, 3*H*Hd) f32
    qkv = qkv.reshape(B, L, 3 * H * Hd)                   # sublane split only

    def heads(group):
        base = group * H * Hd
        hs = jnp.stack(
            [qkv[:, :, base + h * Hd: base + (h + 1) * Hd] for h in range(H)],
            axis=0)                                       # (H, B, L, Hd)
        return hs.reshape(G, L, Hd).astype(jnp.bfloat16)  # fold B into head axis

    q = heads(0)                                          # (H*B, L, Hd) bf16
    k = heads(1)
    v = heads(2)

    # ---- attention: one batched contraction over all (head, batch) pairs ---
    s = jnp.einsum("gld,gmd->glm", q, k,
                   preferred_element_type=jnp.float32)    # (H*B, L, L) f32
    s = s + mask_ref[...][None, :, :]                     # additive mask

    # numerically stable softmax, kept in f32 (VPU/EUP)
    s = s - jnp.max(s, axis=-1, keepdims=True)
    p = jnp.exp(s)
    p = p * pl.reciprocal(jnp.sum(p, axis=-1, keepdims=True), approx=True)
    # TODO(synk): attention dropout omitted (nn.Dropout is identity in eval).

    o = jnp.einsum("glm,gmd->gld", p.astype(jnp.bfloat16), v,
                   preferred_element_type=jnp.float32)    # (H*B, L, Hd) f32
    o = o.astype(jnp.bfloat16)

    # ---- output projection: sum_h (o_h @ wo_h) == concat(heads) @ wo -------
    # Per-head 2-D matmuls accumulated in-place in f32 (no (H, B*L, D) temp).
    wo = wo_ref[...]                                      # (H, Hd, D) bf16
    out = jnp.dot(o[0 * B:1 * B].reshape(B * L, Hd), wo[0],
                  preferred_element_type=jnp.float32)     # (B*L, D) f32
    for h in range(1, H):
        out = out + jnp.dot(o[h * B:(h + 1) * B].reshape(B * L, Hd), wo[h],
                            preferred_element_type=jnp.float32)
    o_ref[...] = out


# ---------------------------------------------------------------------------
# Weight pre-packing (done ONCE, outside the per-call wrapper)
# ---------------------------------------------------------------------------
def pack_weights(wq, wk, wv, wo, *, num_heads, head_dim):
    """wq/wk/wv: (D, H*Hd); wo: (H*Hd, D)  ->  (wqkv (D,3*H*Hd) bf16, wo3 (H,Hd,D) bf16)."""
    D = wq.shape[0]
    H, Hd = num_heads, head_dim
    scale = 1.0 / math.sqrt(Hd)
    # Fold the 1/sqrt(Hd) attention scale into the Q columns (free at runtime).
    wqkv = jnp.concatenate([wq * scale, wk, wv], axis=-1).astype(jnp.bfloat16)
    wo3 = wo.reshape(H, Hd, D).astype(jnp.bfloat16)       # head-major
    return wqkv, wo3


# ---------------------------------------------------------------------------
# Wrapper
# ---------------------------------------------------------------------------
def temporal_depth_decoder_attention(x, wqkv, wo3, mask=None,
                                      *, num_heads, head_dim):
    """x: (B, L, D) f32; wqkv: (D, 3*H*Hd) bf16; wo3: (H, Hd, D) bf16; mask: (L, L) or None."""
    B, L, D = x.shape
    H, Hd = num_heads, head_dim

    if mask is None:
        mask = jnp.zeros((L, L), jnp.float32)
    mask = mask.astype(jnp.float32)

    x2d = x.reshape(B * L, D).astype(jnp.bfloat16)        # bf16 MXU operands

    kernel = functools.partial(_attn_kernel, batch=B, seq_len=L,
                               num_heads=H, head_dim=Hd)

    out2d = pl.pallas_call(
        kernel,
        out_shape=jax.ShapeDtypeStruct((B * L, D), jnp.float32),
        grid=(1,),                                 # single step: no per-step overhead
        in_specs=[
            pl.BlockSpec((B * L, D), lambda i: (0, 0)),             # x (bf16)
            pl.BlockSpec((D, 3 * H * Hd), lambda i: (0, 0)),        # fused QKV weight
            pl.BlockSpec((H, Hd, D), lambda i: (0, 0, 0)),          # wo (head-major)
            pl.BlockSpec((L, L), lambda i: (0, 0)),                 # additive mask
        ],
        out_specs=pl.BlockSpec((B * L, D), lambda i: (0, 0)),
        compiler_params=pltpu.CompilerParams(
            dimension_semantics=("arbitrary",)),
    )(x2d, wqkv, wo3, mask)

    return out2d.reshape(B, L, D)


# ---------------------------------------------------------------------------
# Pure-JAX reference (mirrors the PyTorch forward exactly, dropout = identity)
# ---------------------------------------------------------------------------
def reference(x, wq, wk, wv, wo, mask, *, num_heads, head_dim):
    B, L, D = x.shape
    q = (x @ wq).reshape(B, L, num_heads, head_dim).transpose(0, 2, 1, 3)
    k = (x @ wk).reshape(B, L, num_heads, head_dim).transpose(0, 2, 1, 3)
    v = (x @ wv).reshape(B, L, num_heads, head_dim).transpose(0, 2, 1, 3)
    scale = math.sqrt(head_dim)
    scores = jnp.einsum("bhld,bhmd->bhlm", q, k) / scale
    scores = scores + mask[None, None]
    attn = jax.nn.softmax(scores, axis=-1)
    out = jnp.einsum("bhlm,bhmd->bhld", attn, v)
    out = out.transpose(0, 2, 1, 3).reshape(B, L, num_heads * head_dim)
    return out @ wo


# ---------------------------------------------------------------------------
# Main
# ---------------------------------------------------------------------------
if __name__ == "__main__":
    B, L = 2, 8
    num_heads, head_dim = 4, 8
    D = 32                        # decoder_audio_hidden_dim
    HHd = num_heads * head_dim    # 32

    key = jax.random.PRNGKey(0)
    kx, kq, kk, kv, ko = jax.random.split(key, 5)

    x = jax.random.normal(kx, (B, L, D), dtype=jnp.float32)

    # Deterministic nn.Linear-style init (uniform ±1/sqrt(fan_in)), stored as
    # (in_features, out_features) so the math is x @ W (== nn.Linear with W.T).
    bound_in = 1.0 / math.sqrt(D)
    bound_o = 1.0 / math.sqrt(HHd)
    wq = jax.random.uniform(kq, (D, HHd), jnp.float32, -bound_in, bound_in)
    wk = jax.random.uniform(kk, (D, HHd), jnp.float32, -bound_in, bound_in)
    wv = jax.random.uniform(kv, (D, HHd), jnp.float32, -bound_in, bound_in)
    wo = jax.random.uniform(ko, (HHd, D), jnp.float32, -bound_o, bound_o)

    # Causal additive mask (module accepts an optional additive mask).
    mask = jnp.where(jnp.tril(jnp.ones((L, L), dtype=bool)),
                     0.0, -1e9).astype(jnp.float32)

    # Pack weights ONCE (pre-pack point from the perf review), then call.
    wqkv_packed, wo_packed = pack_weights(wq, wk, wv, wo,
                                          num_heads=num_heads,
                                          head_dim=head_dim)

    out = temporal_depth_decoder_attention(
        x, wqkv_packed, wo_packed, mask,
        num_heads=num_heads, head_dim=head_dim)
    out = jax.block_until_ready(out)

    ref = reference(x, wq, wk, wv, wo, mask,
                    num_heads=num_heads, head_dim=head_dim)

    # bf16 MXU operands with f32 accumulation + approx reciprocal -> loosened tol.
    np.testing.assert_allclose(np.asarray(out), np.asarray(ref),
                               rtol=5e-2, atol=5e-2)
    print("KERNEL_OK")
</pallas_src>

<mosaic_0001>
module attributes {stable_mosaic.version = 11 : i64} {
  func.func @_attn_kernel(%arg0: i32, %arg1: memref<16x32xbf16, #tpu.memory_space<vmem>>, %arg2: memref<32x96xbf16, #tpu.memory_space<vmem>>, %arg3: memref<4x8x32xbf16, #tpu.memory_space<vmem>>, %arg4: memref<8x8xf32, #tpu.memory_space<vmem>>, %arg5: memref<16x32xf32, #tpu.memory_space<vmem>>) attributes {dimension_semantics = [#tpu.dimension_semantics<arbitrary>], iteration_bounds = array<i64: 1>, scalar_prefetch = 0 : i64, scratch_operands = 0 : i64, tpu.core_type = #tpu.core_type<tc>, window_params = [{pipeline_mode = #tpu.pipeline_mode<synchronous>, transform_indices = @transform_0, window_bounds = array<i64: 16, 32>}, {pipeline_mode = #tpu.pipeline_mode<synchronous>, transform_indices = @transform_1, window_bounds = array<i64: 32, 96>}, {pipeline_mode = #tpu.pipeline_mode<synchronous>, transform_indices = @transform_2, window_bounds = array<i64: 4, 8, 32>}, {pipeline_mode = #tpu.pipeline_mode<synchronous>, transform_indices = @transform_3, window_bounds = array<i64: 8, 8>}, {pipeline_mode = #tpu.pipeline_mode<synchronous>, transform_indices = @transform_4, window_bounds = array<i64: 16, 32>}]} {
    %c0 = arith.constant 0 : index
    %c0_0 = arith.constant 0 : index
    %0 = vector.load %arg1[%c0, %c0_0] : memref<16x32xbf16, #tpu.memory_space<vmem>>, vector<16x32xbf16>
    %c0_1 = arith.constant 0 : index
    %c0_2 = arith.constant 0 : index
    %1 = vector.load %arg2[%c0_1, %c0_2] : memref<32x96xbf16, #tpu.memory_space<vmem>>, vector<32x96xbf16>
    %cst = arith.constant dense<0.000000e+00> : vector<16x96xf32>
    %2 = tpu.matmul %0, %1, %cst {dimension_numbers = #tpu.dot_dimension_numbers<[1], [0], [0], [1], [0, 0, 1, 1], [], []>} : vector<16x32xbf16>, vector<32x96xbf16>, vector<16x96xf32> -> vector<16x96xf32>
    %3 = vector.shape_cast %2 : vector<16x96xf32> to vector<2x8x96xf32>
    %4 = vector.extract_strided_slice %3 {offsets = [0, 0, 0], sizes = [2, 8, 8], strides = [1, 1, 1]} : vector<2x8x96xf32> to vector<2x8x8xf32>
    %5 = vector.extract_strided_slice %3 {offsets = [0, 0, 8], sizes = [2, 8, 8], strides = [1, 1, 1]} : vector<2x8x96xf32> to vector<2x8x8xf32>
    %6 = vector.extract_strided_slice %3 {offsets = [0, 0, 16], sizes = [2, 8, 8], strides = [1, 1, 1]} : vector<2x8x96xf32> to vector<2x8x8xf32>
    %7 = vector.extract_strided_slice %3 {offsets = [0, 0, 24], sizes = [2, 8, 8], strides = [1, 1, 1]} : vector<2x8x96xf32> to vector<2x8x8xf32>
    %8 = vector.shape_cast %4 : vector<2x8x8xf32> to vector<1x2x8x8xf32>
    %9 = vector.shape_cast %5 : vector<2x8x8xf32> to vector<1x2x8x8xf32>
    %10 = vector.shape_cast %6 : vector<2x8x8xf32> to vector<1x2x8x8xf32>
    %11 = vector.shape_cast %7 : vector<2x8x8xf32> to vector<1x2x8x8xf32>
    %12 = tpu.concatenate %8, %9, %10, %11 in 0 : vector<1x2x8x8xf32>, vector<1x2x8x8xf32>, vector<1x2x8x8xf32>, vector<1x2x8x8xf32> -> vector<4x2x8x8xf32>
    %13 = vector.shape_cast %12 : vector<4x2x8x8xf32> to vector<8x8x8xf32>
    %14 = arith.truncf %13 : vector<8x8x8xf32> to vector<8x8x8xbf16>
    %15 = vector.extract_strided_slice %3 {offsets = [0, 0, 32], sizes = [2, 8, 8], strides = [1, 1, 1]} : vector<2x8x96xf32> to vector<2x8x8xf32>
    %16 = vector.extract_strided_slice %3 {offsets = [0, 0, 40], sizes = [2, 8, 8], strides = [1, 1, 1]} : vector<2x8x96xf32> to vector<2x8x8xf32>
    %17 = vector.extract_strided_slice %3 {offsets = [0, 0, 48], sizes = [2, 8, 8], strides = [1, 1, 1]} : vector<2x8x96xf32> to vector<2x8x8xf32>
    %18 = vector.extract_strided_slice %3 {offsets = [0, 0, 56], sizes = [2, 8, 8], strides = [1, 1, 1]} : vector<2x8x96xf32> to vector<2x8x8xf32>
    %19 = vector.shape_cast %15 : vector<2x8x8xf32> to vector<1x2x8x8xf32>
    %20 = vector.shape_cast %16 : vector<2x8x8xf32> to vector<1x2x8x8xf32>
    %21 = vector.shape_cast %17 : vector<2x8x8xf32> to vector<1x2x8x8xf32>
    %22 = vector.shape_cast %18 : vector<2x8x8xf32> to vector<1x2x8x8xf32>
    %23 = tpu.concatenate %19, %20, %21, %22 in 0 : vector<1x2x8x8xf32>, vector<1x2x8x8xf32>, vector<1x2x8x8xf32>, vector<1x2x8x8xf32> -> vector<4x2x8x8xf32>
    %24 = vector.shape_cast %23 : vector<4x2x8x8xf32> to vector<8x8x8xf32>
    %25 = arith.truncf %24 : vector<8x8x8xf32> to vector<8x8x8xbf16>
    %26 = vector.extract_strided_slice %3 {offsets = [0, 0, 64], sizes = [2, 8, 8], strides = [1, 1, 1]} : vector<2x8x96xf32> to vector<2x8x8xf32>
    %27 = vector.extract_strided_slice %3 {offsets = [0, 0, 72], sizes = [2, 8, 8], strides = [1, 1, 1]} : vector<2x8x96xf32> to vector<2x8x8xf32>
    %28 = vector.extract_strided_slice %3 {offsets = [0, 0, 80], sizes = [2, 8, 8], strides = [1, 1, 1]} : vector<2x8x96xf32> to vector<2x8x8xf32>
    %29 = vector.extract_strided_slice %3 {offsets = [0, 0, 88], sizes = [2, 8, 8], strides = [1, 1, 1]} : vector<2x8x96xf32> to vector<2x8x8xf32>
    %30 = vector.shape_cast %26 : vector<2x8x8xf32> to vector<1x2x8x8xf32>
    %31 = vector.shape_cast %27 : vector<2x8x8xf32> to vector<1x2x8x8xf32>
    %32 = vector.shape_cast %28 : vector<2x8x8xf32> to vector<1x2x8x8xf32>
    %33 = vector.shape_cast %29 : vector<2x8x8xf32> to vector<1x2x8x8xf32>
    %34 = tpu.concatenate %30, %31, %32, %33 in 0 : vector<1x2x8x8xf32>, vector<1x2x8x8xf32>, vector<1x2x8x8xf32>, vector<1x2x8x8xf32> -> vector<4x2x8x8xf32>
    %35 = vector.shape_cast %34 : vector<4x2x8x8xf32> to vector<8x8x8xf32>
    %36 = arith.truncf %35 : vector<8x8x8xf32> to vector<8x8x8xbf16>
    "tpu.trace_start"() <{level = 10 : i32, message = "gld,gmd->glm"}> : () -> ()
    %cst_3 = arith.constant dense<0.000000e+00> : vector<8x8x8xf32>
    %37 = tpu.matmul %14, %25, %cst_3 {dimension_numbers = #tpu.dot_dimension_numbers<[2], [2], [1], [1], [0, 0, 0, 1, 1, 1], [0], [0]>} : vector<8x8x8xbf16>, vector<8x8x8xbf16>, vector<8x8x8xf32> -> vector<8x8x8xf32>
    "tpu.trace_stop"() : () -> ()
    %c0_4 = arith.constant 0 : index
    %c0_5 = arith.constant 0 : index
    %38 = vector.load %arg4[%c0_4, %c0_5] : memref<8x8xf32, #tpu.memory_space<vmem>>, vector<8x8xf32>
    %39 = vector.shape_cast %38 : vector<8x8xf32> to vector<1x8x8xf32>
    %40 = vector.broadcast %39 : vector<1x8x8xf32> to vector<8x8x8xf32>
    %41 = arith.addf %37, %40 : vector<8x8x8xf32>
    %cst_6 = arith.constant dense<0xFF800000> : vector<8x8xf32>
    %42 = vector.multi_reduction <maximumf>, %41, %cst_6 [2] : vector<8x8x8xf32> to vector<8x8xf32>
    %43 = vector.shape_cast %42 : vector<8x8xf32> to vector<8x8x1xf32>
    %44 = vector.broadcast %43 : vector<8x8x1xf32> to vector<8x8x8xf32>
    %45 = arith.subf %41, %44 : vector<8x8x8xf32>
    %46 = math.exp %45 : vector<8x8x8xf32>
    %cst_7 = arith.constant dense<0.000000e+00> : vector<8x8xf32>
    %47 = vector.multi_reduction <add>, %46, %cst_7 [2] : vector<8x8x8xf32> to vector<8x8xf32>
    %48 = vector.shape_cast %47 : vector<8x8xf32> to vector<8x8x1xf32>
    %49 = tpu.reciprocal %48 {approx = true} : vector<8x8x1xf32> -> vector<8x8x1xf32>
    %50 = vector.broadcast %49 : vector<8x8x1xf32> to vector<8x8x8xf32>
    %51 = arith.mulf %46, %50 : vector<8x8x8xf32>
    %52 = arith.truncf %51 : vector<8x8x8xf32> to vector<8x8x8xbf16>
    "tpu.trace_start"() <{level = 10 : i32, message = "glm,gmd->gld"}> : () -> ()
    %cst_8 = arith.constant dense<0.000000e+00> : vector<8x8x8xf32>
    %53 = tpu.matmul %52, %36, %cst_8 {dimension_numbers = #tpu.dot_dimension_numbers<[2], [1], [1], [2], [0, 0, 0, 1, 1, 2], [0], [0]>} : vector<8x8x8xbf16>, vector<8x8x8xbf16>, vector<8x8x8xf32> -> vector<8x8x8xf32>
    "tpu.trace_stop"() : () -> ()
    %54 = arith.truncf %53 : vector<8x8x8xf32> to vector<8x8x8xbf16>
    %c0_9 = arith.constant 0 : index
    %c0_10 = arith.constant 0 : index
    %c0_11 = arith.constant 0 : index
    %55 = vector.load %arg3[%c0_9, %c0_10, %c0_11] : memref<4x8x32xbf16, #tpu.memory_space<vmem>>, vector<4x8x32xbf16>
    %56 = vector.extract_strided_slice %54 {offsets = [0, 0, 0], sizes = [2, 8, 8], strides = [1, 1, 1]} : vector<8x8x8xbf16> to vector<2x8x8xbf16>
    %57 = vector.shape_cast %56 : vector<2x8x8xbf16> to vector<16x8xbf16>
    %58 = vector.extract_strided_slice %55 {offsets = [0, 0, 0], sizes = [1, 8, 32], strides = [1, 1, 1]} : vector<4x8x32xbf16> to vector<1x8x32xbf16>
    %59 = vector.shape_cast %58 : vector<1x8x32xbf16> to vector<8x32xbf16>
    %cst_12 = arith.constant dense<0.000000e+00> : vector<16x32xf32>
    %60 = tpu.matmul %57, %59, %cst_12 {dimension_numbers = #tpu.dot_dimension_numbers<[1], [0], [0], [1], [0, 0, 1, 1], [], []>} : vector<16x8xbf16>, vector<8x32xbf16>, vector<16x32xf32> -> vector<16x32xf32>
    %61 = vector.extract_strided_slice %54 {offsets = [2, 0, 0], sizes = [2, 8, 8], strides = [1, 1, 1]} : vector<8x8x8xbf16> to vector<2x8x8xbf16>
    %62 = vector.shape_cast %61 : vector<2x8x8xbf16> to vector<16x8xbf16>
    %63 = vector.extract_strided_slice %55 {offsets = [1, 0, 0], sizes = [1, 8, 32], strides = [1, 1, 1]} : vector<4x8x32xbf16> to vector<1x8x32xbf16>
    %64 = vector.shape_cast %63 : vector<1x8x32xbf16> to vector<8x32xbf16>
    %cst_13 = arith.constant dense<0.000000e+00> : vector<16x32xf32>
    %65 = tpu.matmul %62, %64, %cst_13 {dimension_numbers = #tpu.dot_dimension_numbers<[1], [0], [0], [1], [0, 0, 1, 1], [], []>} : vector<16x8xbf16>, vector<8x32xbf16>, vector<16x32xf32> -> vector<16x32xf32>
    %66 = arith.addf %60, %65 : vector<16x32xf32>
    %67 = vector.extract_strided_slice %54 {offsets = [4, 0, 0], sizes = [2, 8, 8], strides = [1, 1, 1]} : vector<8x8x8xbf16> to vector<2x8x8xbf16>
    %68 = vector.shape_cast %67 : vector<2x8x8xbf16> to vector<16x8xbf16>
    %69 = vector.extract_strided_slice %55 {offsets = [2, 0, 0], sizes = [1, 8, 32], strides = [1, 1, 1]} : vector<4x8x32xbf16> to vector<1x8x32xbf16>
    %70 = vector.shape_cast %69 : vector<1x8x32xbf16> to vector<8x32xbf16>
    %cst_14 = arith.constant dense<0.000000e+00> : vector<16x32xf32>
    %71 = tpu.matmul %68, %70, %cst_14 {dimension_numbers = #tpu.dot_dimension_numbers<[1], [0], [0], [1], [0, 0, 1, 1], [], []>} : vector<16x8xbf16>, vector<8x32xbf16>, vector<16x32xf32> -> vector<16x32xf32>
    %72 = arith.addf %66, %71 : vector<16x32xf32>
    %73 = vector.extract_strided_slice %54 {offsets = [6, 0, 0], sizes = [2, 8, 8], strides = [1, 1, 1]} : vector<8x8x8xbf16> to vector<2x8x8xbf16>
    %74 = vector.shape_cast %73 : vector<2x8x8xbf16> to vector<16x8xbf16>
    %75 = vector.extract_strided_slice %55 {offsets = [3, 0, 0], sizes = [1, 8, 32], strides = [1, 1, 1]} : vector<4x8x32xbf16> to vector<1x8x32xbf16>
    %76 = vector.shape_cast %75 : vector<1x8x32xbf16> to vector<8x32xbf16>
    %cst_15 = arith.constant dense<0.000000e+00> : vector<16x32xf32>
    %77 = tpu.matmul %74, %76, %cst_15 {dimension_numbers = #tpu.dot_dimension_numbers<[1], [0], [0], [1], [0, 0, 1, 1], [], []>} : vector<16x8xbf16>, vector<8x32xbf16>, vector<16x32xf32> -> vector<16x32xf32>
    %78 = arith.addf %72, %77 : vector<16x32xf32>
    %c0_16 = arith.constant 0 : index
    %c0_17 = arith.constant 0 : index
    %79 = vector.load %arg5[%c0_16, %c0_17] : memref<16x32xf32, #tpu.memory_space<vmem>>, vector<16x32xf32>
    tpu.vector_store %arg5[%c0_16, %c0_17], %78 {strides = array<i32>} : memref<16x32xf32, #tpu.memory_space<vmem>>, vector<16x32xf32>,
    return
  }
  func.func @transform_0(%arg0: i32) -> (i32, i32) {
    %c0_i32 = arith.constant 0 : i32
    %c0_i32_0 = arith.constant 0 : i32
    %c0_i32_1 = arith.constant 0 : i32
    return %c0_i32, %c0_i32_0 : i32, i32
  }
  func.func @transform_1(%arg0: i32) -> (i32, i32) {
    %c0_i32 = arith.constant 0 : i32
    %c0_i32_0 = arith.constant 0 : i32
    %c0_i32_1 = arith.constant 0 : i32
    return %c0_i32, %c0_i32_0 : i32, i32
  }
  func.func @transform_2(%arg0: i32) -> (i32, i32, i32) {
    %c0_i32 = arith.constant 0 : i32
    %c0_i32_0 = arith.constant 0 : i32
    %c0_i32_1 = arith.constant 0 : i32
    %c0_i32_2 = arith.constant 0 : i32
    return %c0_i32, %c0_i32_0, %c0_i32_1 : i32, i32, i32
  }
  func.func @transform_3(%arg0: i32) -> (i32, i32) {
    %c0_i32 = arith.constant 0 : i32
    %c0_i32_0 = arith.constant 0 : i32
    %c0_i32_1 = arith.constant 0 : i32
    return %c0_i32, %c0_i32_0 : i32, i32
  }
  func.func @transform_4(%arg0: i32) -> (i32, i32) {
    %c0_i32 = arith.constant 0 : i32
    %c0_i32_0 = arith.constant 0 : i32
    %c0_i32_1 = arith.constant 0 : i32
    return %c0_i32, %c0_i32_0 : i32, i32
  }
}

</mosaic_0001>

<llo_original>
// kernel: tpu_custom_call.1
$region0: #{tpu_custom_call.1}
  #allocation0 [shape = 'u32[]', space=smem, size = 0x4, offset = 0x4, fixed_abs, tag = 'smem constant byte address 0x4 - core index']
  #allocation1 [shape = 'u32[144,128]{1,0:T(1,128)}', space=vmem, size = 0x12000, scoped, tag = 'internal scratch']
  %s0 = inlined_call_operand.hbm [shape: bf16[16,32], index: 0, kind: input, shape index: {}]
  %s1 = inlined_call_operand.hbm [shape: bf16[32,96], index: 1, kind: input, shape index: {}]
  %s2 = inlined_call_operand.hbm [shape: bf16[4,8,32], index: 2, kind: input, shape index: {}]
  %s3 = inlined_call_operand.vmem [shape: f32[8,8], index: 3, kind: input, shape index: {}]
  %s4 = inlined_call_operand.hbm [shape: f32[16,32], index: 4, kind: output, shape index: {}]
  %s5 = sld [smem:[#allocation0]]
  $region38: #{tpu_custom_call.1} parent=0
    _
  %s7 = ssub.s32 1, %s5
  %s8 = scalar_select 0, %s7, %s5
  $region1: #{tpu_custom_call.1} parent=0
    #allocation2 [shape = 'u8[4096]{0}', space=vmem, size = 0x1000, scoped, tag = 'input window, operand 0, single buffered']
    #allocation3 [shape = 's32[1]{0}', space=sflag, size = 0x4, scoped, tag = 'scoped memory for tpu_custom_call.1']
    #allocation4 [shape = 's32[1]{0}', space=sflag, size = 0x4, scoped, tag = 'scoped memory for tpu_custom_call.1']
    #allocation5 [shape = 'u8[8192]{0}', space=vmem, size = 0x2000, scoped, tag = 'input window, operand 1, single buffered']
    #allocation6 [shape = 's32[1]{0}', space=sflag, size = 0x4, scoped, tag = 'scoped memory for tpu_custom_call.1']
    #allocation7 [shape = 'u8[8192]{0}', space=vmem, size = 0x2000, scoped, tag = 'input window, operand 2, single buffered']
    #allocation8 [shape = 'u8[8192]{0}', space=vmem, size = 0x2000, scoped, tag = 'output window, operand 0, single buffered']
    %9 = vsyncpa [#allocation3], 0
    %10 = vsyncpa [#allocation6], 0
    %11 = vsyncpa [#allocation4], 0
    // Predicated region
    $region2: #{tpu_custom_call.1} parent=1 // pred_check
      _
    $region3: #{tpu_custom_call.1} parent=1 // pred_check_branch
      %13 = sbr.rel (0) target = $region5
    $region4: #{tpu_custom_call.1} parent=1 // pred_region
      %s15 = ssub.s32 128, 128
      %16 = vsyncadd [#allocation3], %s15
      %s17 = sshll.u32 [#allocation2], 4
      %s18 = int_to_ptr.vmem [resolvable:$true] %s17
      %23 = dma.hbm_to_vmem [thread:$0]  %s0, 128, %s18, [#allocation3], 64, 64, 4
    $region5: #{tpu_custom_call.1} parent=1 // pred_fallthru
      _
    // Predicated region
    $region6: #{tpu_custom_call.1} parent=1 // pred_check
      _
    $region7: #{tpu_custom_call.1} parent=1 // pred_check_branch
      %25 = sbr.rel (0) target = $region9
    $region8: #{tpu_custom_call.1} parent=1 // pred_region
      %s27 = ssub.s32 256, 256
      %28 = vsyncadd [#allocation6], %s27
      %s29 = sshll.u32 [#allocation5], 4
      %s30 = int_to_ptr.vmem [resolvable:$true] %s29
      %35 = dma.hbm_to_vmem [thread:$0]  %s1, 256, %s30, [#allocation6], 64, 64, 4
    $region9: #{tpu_custom_call.1} parent=1 // pred_fallthru
      _
    // Predicated region
    $region10: #{tpu_custom_call.1} parent=1 // pred_check
      _
    $region11: #{tpu_custom_call.1} parent=1 // pred_check_branch
      %37 = sbr.rel (0) target = $region13
    $region12: #{tpu_custom_call.1} parent=1 // pred_region
      %s39 = ssub.s32 256, 256
      %40 = vsyncadd [#allocation6], %s39
      %s41 = sshll.u32 [#allocation7], 4
      %s42 = int_to_ptr.vmem [resolvable:$true] %s41
      %47 = dma.hbm_to_vmem [thread:$0]  %s2, 256, %s42, [#allocation6], 64, 64, 4
    $region13: #{tpu_custom_call.1} parent=1 // pred_fallthru
      _
    // Predicated region
    $region14: #{tpu_custom_call.1} parent=1 // pred_check
      _
    $region15: #{tpu_custom_call.1} parent=1 // pred_check_branch
      %49 = sbr.rel (0) target = $region17
    $region16: #{tpu_custom_call.1} parent=1 // pred_region
      _
    $region17: #{tpu_custom_call.1} parent=1 // pred_fallthru
      _
    // Predicated region
    $region18: #{tpu_custom_call.1} parent=1 // pred_check
      _
    $region19: #{tpu_custom_call.1} parent=1 // pred_check_branch
      %51 = sbr.rel (0) target = $region21
    $region20: #{tpu_custom_call.1} parent=1 // pred_region
      %52 = dma.done [#allocation3], 128
    $region21: #{tpu_custom_call.1} parent=1 // pred_fallthru
      _
    // Predicated region
    $region22: #{tpu_custom_call.1} parent=1 // pred_check
      _
    $region23: #{tpu_custom_call.1} parent=1 // pred_check_branch
      %54 = sbr.rel (0) target = $region25
    $region24: #{tpu_custom_call.1} parent=1 // pred_region
      %55 = dma.done [#allocation6], 256
    $region25: #{tpu_custom_call.1} parent=1 // pred_fallthru
      _
    // Predicated region
    $region26: #{tpu_custom_call.1} parent=1 // pred_check
      _
    $region27: #{tpu_custom_call.1} parent=1 // pred_check_branch
      %57 = sbr.rel (0) target = $region29
    $region28: #{tpu_custom_call.1} parent=1 // pred_region
      %58 = dma.done [#allocation6], 256
    $region29: #{tpu_custom_call.1} parent=1 // pred_fallthru
      _
    %v60 = vld [vmem:[#allocation2] sm:$0xf]
    %v61 = vld [vmem:[#allocation2 + $0x4] sm:$0xf]
    %v62 = vld [vmem:[#allocation5] sm:$0xf]
    %v63 = vld [vmem:[#allocation5 + $0x4] sm:$0xf]
    %v64 = vld [vmem:[#allocation5 + $0x8] sm:$0xf]
    %v65 = vld [vmem:[#allocation5 + $0xc] sm:$0xf]
    %v68 = vunpack.c.l.b16 %v60
    %v69 = vunpack.c.l.b16 %v61
    %v70 = vpack.c.b16 %v69, %v68
    %v75 = vunpack.c.l.b16 %v62
    %v76 = vunpack.c.l.b16 %v63
    %v77 = vunpack.c.l.b16 %v64
    %v78 = vunpack.c.l.b16 %v65
    %v79 = vpack.c.b16 %v76, %v75
    %v80 = vpack.c.b16 %v78, %v77
    %vm83 = vcmask 261120
    %v85 = vsel %vm83, %v70, 0
    %87 = vmatprep.subr.bf16.mxu0 0
    %88 = vmatpush1.bf16.msra.mxu0 %v79
    %89 = vmatprep.subr.bf16.mxu0 0
    %90 = vmatpush1.bf16.msra.mxu0 %v80
    %91 = vmatprep.subr.bf16.mxu0 0
    %92 = vmatpush1.bf16.msra.mxu0 0
    %93 = vmatprep.subr.bf16.mxu0 0
    %94 = vmatpush1.bf16.msra.mxu0 0
    %95 = vmatprep.subr.bf16.mxu0 0
    %96 = vmatpush1.bf16.msra.mxu0 0
    %97 = vmatprep.subr.bf16.mxu0 0
    %98 = vmatpush1.bf16.msra.mxu0 0
    %99 = vmatprep.subr.bf16.mxu0 0
    %100 = vmatpush1.bf16.msra.mxu0 0
    %101 = vmatprep.subr.bf16.mxu0 0
    %102 = vmatpush1.bf16.msra.mxu0 0
    %103 = vmatprep.subr.bf16.mxu0 0
    %104 = vmatpush1.bf16.msra.mxu0 0
    %105 = vmatprep.subr.bf16.mxu0 0
    %106 = vmatpush1.bf16.msra.mxu0 0
    %107 = vmatprep.subr.bf16.mxu0 0
    %108 = vmatpush1.bf16.msra.mxu0 0
    %109 = vmatprep.subr.bf16.mxu0 0
    %110 = vmatpush1.bf16.msra.mxu0 0
    %111 = vmatprep.subr.bf16.mxu0 0
    %112 = vmatpush1.bf16.msra.mxu0 0
    %113 = vmatprep.subr.bf16.mxu0 0
    %114 = vmatpush1.bf16.msra.mxu0 0
    %115 = vmatprep.subr.bf16.mxu0 0
    %116 = vmatpush1.bf16.msra.mxu0 0
    %117 = vmatprep.subr.bf16.mxu0 0
    %118 = vmatpush1.bf16.msra.mxu0 0
    %119 = vmatprep.mubr.bf16.mxu0 0
    %120 = vmatmul.mubr.bf16.gmra.mrb[0].mxu0 %v85
    %v121 = vpop.f32.mrb[0].mxu0
    %v122 = vadd.f32 0.0, %v121
    %v123 = vpop.f32.mrb[0].mxu0
    %v124 = vpop.f32.mrb[0].mxu0
    %v125 = vadd.f32 0.0, %v124
    %v126 = vpop.f32.mrb[0].mxu0
    %127 = vdwg.mxu0
    %130 = vrot.lane.b32.xlu0 %v122, 120
    %v131 = vpop.permute.xlu0 %130
    %132 = vrot.lane.b32.xlu0 %v125, 120
    %v133 = vpop.permute.xlu0 %132
    %136 = vrot.lane.b32.xlu0 %v122, 112
    %v137 = vpop.permute.xlu0 %136
    %138 = vrot.lane.b32.xlu0 %v125, 112
    %v139 = vpop.permute.xlu0 %138
    %142 = vrot.lane.b32.xlu0 %v122, 104
    %v143 = vpop.permute.xlu0 %142
    %144 = vrot.lane.b32.xlu0 %v125, 104
    %v145 = vpop.permute.xlu0 %144
    %v148 = vpack.c.bf16 %v122, %v122
    %v149 = vpack.c.bf16 %v125, %v125
    %v150 = vpack.c.bf16 %v131, %v131
    %v151 = vpack.c.bf16 %v133, %v133
    %v152 = vpack.c.bf16 %v137, %v137
    %v153 = vpack.c.bf16 %v139, %v139
    %v154 = vpack.c.bf16 %v143, %v143
    %v155 = vpack.c.bf16 %v145, %v145
    %v156 = vld [vmem:[%s3] sm:$0xff]
    %158 = vrot.lane.b32.xlu0 %v148, 96
    %v159 = vpop.permute.xlu0 %158
    %vm160 = vcmask 64512
    %v162 = vsel %vm160, %v148, 0
    %v165 = vsel %vm160, %v159, 0
    %167 = vmatprep.subr.bf16.mxu0 0
    %168 = vmatpush1.bf16.xpose.msra.mxu0 %v165
    %169 = vmatprep.subr.bf16.mxu0 0
    %170 = vmatpush1.bf16.xpose.msra.mxu0 0
    %171 = vmatprep.subr.bf16.mxu0 0
    %172 = vmatpush1.bf16.xpose.msra.mxu0 0
    %173 = vmatprep.subr.bf16.mxu0 0
    %174 = vmatpush1.bf16.xpose.msra.mxu0 0
    %175 = vmatprep.subr.bf16.mxu0 0
    %176 = vmatpush1.bf16.xpose.msra.mxu0 0
    %177 = vmatprep.subr.bf16.mxu0 0
    %178 = vmatpush1.bf16.xpose.msra.mxu0 0
    %179 = vmatprep.subr.bf16.mxu0 0
    %180 = vmatpush1.bf16.xpose.msra.mxu0 0
    %181 = vmatprep.subr.bf16.mxu0 0
    %182 = vmatpush1.bf16.xpose.msra.mxu0 0
    %183 = vmatprep.subr.bf16.mxu0 0
    %184 = vmatpush1.bf16.xpose.msra.mxu0 0
    %185 = vmatprep.subr.bf16.mxu0 0
    %186 = vmatpush1.bf16.xpose.msra.mxu0 0
    %187 = vmatprep.subr.bf16.mxu0 0
    %188 = vmatpush1.bf16.xpose.msra.mxu0 0
    %189 = vmatprep.subr.bf16.mxu0 0
    %190 = vmatpush1.bf16.xpose.msra.mxu0 0
    %191 = vmatprep.subr.bf16.mxu0 0
    %192 = vmatpush1.bf16.xpose.msra.mxu0 0
    %193 = vmatprep.subr.bf16.mxu0 0
    %194 = vmatpush1.bf16.xpose.msra.mxu0 0
    %195 = vmatprep.subr.bf16.mxu0 0
    %196 = vmatpush1.bf16.xpose.msra.mxu0 0
    %197 = vmatprep.subr.bf16.mxu0 0
    %198 = vmatpush1.bf16.xpose.msra.mxu0 0
    %199 = vmatprep.mubr.bf16.mxu0 0
    %200 = vmatmul.mubr.bf16.gmra.mrb[0].mxu0 %v162
    %v201 = vpop.f32.mrb[0].mxu0
    %v202 = vadd.f32 %v156, %v201
    %v203 = vpop.f32.mrb[0].mxu0
    %v204 = vpop.f32.mrb[0].mxu0
    %v205 = vpop.f32.mrb[0].mxu0
    %206 = vdwg.mxu0
    %208 = vrot.lane.b32.xlu0 %v149, 96
    %v209 = vpop.permute.xlu0 %208
    %v211 = vsel %vm160, %v149, 0
    %v214 = vsel %vm160, %v209, 0
    %216 = vmatprep.subr.bf16.mxu0 0
    %217 = vmatpush1.bf16.xpose.msra.mxu0 %v214
    %218 = vmatprep.subr.bf16.mxu0 0
    %219 = vmatpush1.bf16.xpose.msra.mxu0 0
    %220 = vmatprep.subr.bf16.mxu0 0
    %221 = vmatpush1.bf16.xpose.msra.mxu0 0
    %222 = vmatprep.subr.bf16.mxu0 0
    %223 = vmatpush1.bf16.xpose.msra.mxu0 0
    %224 = vmatprep.subr.bf16.mxu0 0
    %225 = vmatpush1.bf16.xpose.msra.mxu0 0
    %226 = vmatprep.subr.bf16.mxu0 0
    %227 = vmatpush1.bf16.xpose.msra.mxu0 0
    %228 = vmatprep.subr.bf16.mxu0 0
    %229 = vmatpush1.bf16.xpose.msra.mxu0 0
    %230 = vmatprep.subr.bf16.mxu0 0
    %231 = vmatpush1.bf16.xpose.msra.mxu0 0
    %232 = vmatprep.subr.bf16.mxu0 0
    %233 = vmatpush1.bf16.xpose.msra.mxu0 0
    %234 = vmatprep.subr.bf16.mxu0 0
    %235 = vmatpush1.bf16.xpose.msra.mxu0 0
    %236 = vmatprep.subr.bf16.mxu0 0
    %237 = vmatpush1.bf16.xpose.msra.mxu0 0
    %238 = vmatprep.subr.bf16.mxu0 0
    %239 = vmatpush1.bf16.xpose.msra.mxu0 0
    %240 = vmatprep.subr.bf16.mxu0 0
    %241 = vmatpush1.bf16.xpose.msra.mxu0 0
    %242 = vmatprep.subr.bf16.mxu0 0
    %243 = vmatpush1.bf16.xpose.msra.mxu0 0
    %244 = vmatprep.subr.bf16.mxu0 0
    %245 = vmatpush1.bf16.xpose.msra.mxu0 0
    %246 = vmatprep.subr.bf16.mxu0 0
    %247 = vmatpush1.bf16.xpose.msra.mxu0 0
    %248 = vmatprep.mubr.bf16.mxu0 0
    %249 = vmatmul.mubr.bf16.gmra.mrb[0].mxu0 %v211
    %v250 = vpop.f32.mrb[0].mxu0
    %v251 = vadd.f32 %v156, %v250
    %v252 = vpop.f32.mrb[0].mxu0
    %v253 = vpop.f32.mrb[0].mxu0
    %v254 = vpop.f32.mrb[0].mxu0
    %255 = vdwg.mxu0
    %257 = vrot.lane.b32.xlu0 %v150, 96
    %v258 = vpop.permute.xlu0 %257
    %v260 = vsel %vm160, %v150, 0
    %v263 = vsel %vm160, %v258, 0
    %265 = vmatprep.subr.bf16.mxu0 0
    %266 = vmatpush1.bf16.xpose.msra.mxu0 %v263
    %267 = vmatprep.subr.bf16.mxu0 0
    %268 = vmatpush1.bf16.xpose.msra.mxu0 0
    %269 = vmatprep.subr.bf16.mxu0 0
    %270 = vmatpush1.bf16.xpose.msra.mxu0 0
    %271 = vmatprep.subr.bf16.mxu0 0
    %272 = vmatpush1.bf16.xpose.msra.mxu0 0
    %273 = vmatprep.subr.bf16.mxu0 0
    %274 = vmatpush1.bf16.xpose.msra.mxu0 0
    %275 = vmatprep.subr.bf16.mxu0 0
    %276 = vmatpush1.bf16.xpose.msra.mxu0 0
    %277 = vmatprep.subr.bf16.mxu0 0
    %278 = vmatpush1.bf16.xpose.msra.mxu0 0
    %279 = vmatprep.subr.bf16.mxu0 0
    %280 = vmatpush1.bf16.xpose.msra.mxu0 0
    %281 = vmatprep.subr.bf16.mxu0 0
    %282 = vmatpush1.bf16.xpose.msra.mxu0 0
    %283 = vmatprep.subr.bf16.mxu0 0
    %284 = vmatpush1.bf16.xpose.msra.mxu0 0
    %285 = vmatprep.subr.bf16.mxu0 0
    %286 = vmatpush1.bf16.xpose.msra.mxu0 0
    %287 = vmatprep.subr.bf16.mxu0 0
    %288 = vmatpush1.bf16.xpose.msra.mxu0 0
    %289 = vmatprep.subr.bf16.mxu0 0
    %290 = vmatpush1.bf16.xpose.msra.mxu0 0
    %291 = vmatprep.subr.bf16.mxu0 0
    %292 = vmatpush1.bf16.xpose.msra.mxu0 0
    %293 = vmatprep.subr.bf16.mxu0 0
    %294 = vmatpush1.bf16.xpose.msra.mxu0 0
    %295 = vmatprep.subr.bf16.mxu0 0
    %296 = vmatpush1.bf16.xpose.msra.mxu0 0
    %297 = vmatprep.mubr.bf16.mxu0 0
    %298 = vmatmul.mubr.bf16.gmra.mrb[0].mxu0 %v260
    %v299 = vpop.f32.mrb[0].mxu0
    %v300 = vadd.f32 %v156, %v299
    %v301 = vpop.f32.mrb[0].mxu0
    %v302 = vpop.f32.mrb[0].mxu0
    %v303 = vpop.f32.mrb[0].mxu0
    %304 = vdwg.mxu0
    %306 = vrot.lane.b32.xlu0 %v151, 96
    %v307 = vpop.permute.xlu0 %306
    %v309 = vsel %vm160, %v151, 0
    %v312 = vsel %vm160, %v307, 0
    %314 = vmatprep.subr.bf16.mxu0 0
    %315 = vmatpush1.bf16.xpose.msra.mxu0 %v312
    %316 = vmatprep.subr.bf16.mxu0 0
    %317 = vmatpush1.bf16.xpose.msra.mxu0 0
    %318 = vmatprep.subr.bf16.mxu0 0
    %319 = vmatpush1.bf16.xpose.msra.mxu0 0
    %320 = vmatprep.subr.bf16.mxu0 0
    %321 = vmatpush1.bf16.xpose.msra.mxu0 0
    %322 = vmatprep.subr.bf16.mxu0 0
    %323 = vmatpush1.bf16.xpose.msra.mxu0 0
    %324 = vmatprep.subr.bf16.mxu0 0
    %325 = vmatpush1.bf16.xpose.msra.mxu0 0
    %326 = vmatprep.subr.bf16.mxu0 0
    %327 = vmatpush1.bf16.xpose.msra.mxu0 0
    %328 = vmatprep.subr.bf16.mxu0 0
    %329 = vmatpush1.bf16.xpose.msra.mxu0 0
    %330 = vmatprep.subr.bf16.mxu0 0
    %331 = vmatpush1.bf16.xpose.msra.mxu0 0
    %332 = vmatprep.subr.bf16.mxu0 0
    %333 = vmatpush1.bf16.xpose.msra.mxu0 0
    %334 = vmatprep.subr.bf16.mxu0 0
    %335 = vmatpush1.bf16.xpose.msra.mxu0 0
    %336 = vmatprep.subr.bf16.mxu0 0
    %337 = vmatpush1.bf16.xpose.msra.mxu0 0
    %338 = vmatprep.subr.bf16.mxu0 0
    %339 = vmatpush1.bf16.xpose.msra.mxu0 0
    %340 = vmatprep.subr.bf16.mxu0 0
    %341 = vmatpush1.bf16.xpose.msra.mxu0 0
    %342 = vmatprep.subr.bf16.mxu0 0
    %343 = vmatpush1.bf16.xpose.msra.mxu0 0
    %344 = vmatprep.subr.bf16.mxu0 0
    %345 = vmatpush1.bf16.xpose.msra.mxu0 0
    %346 = vmatprep.mubr.bf16.mxu0 0
    %347 = vmatmul.mubr.bf16.gmra.mrb[0].mxu0 %v309
    %v348 = vpop.f32.mrb[0].mxu0
    %v349 = vadd.f32 %v156, %v348
    %v350 = vpop.f32.mrb[0].mxu0
    %v351 = vpop.f32.mrb[0].mxu0
    %v352 = vpop.f32.mrb[0].mxu0
    %353 = vdwg.mxu0
    %355 = vrot.lane.b32.xlu0 %v152, 96
    %v356 = vpop.permute.xlu0 %355
    %v358 = vsel %vm160, %v152, 0
    %v361 = vsel %vm160, %v356, 0
    %363 = vmatprep.subr.bf16.mxu0 0
    %364 = vmatpush1.bf16.xpose.msra.mxu0 %v361
    %365 = vmatprep.subr.bf16.mxu0 0
    %366 = vmatpush1.bf16.xpose.msra.mxu0 0
    %367 = vmatprep.subr.bf16.mxu0 0
    %368 = vmatpush1.bf16.xpose.msra.mxu0 0
    %369 = vmatprep.subr.bf16.mxu0 0
    %370 = vmatpush1.bf16.xpose.msra.mxu0 0
    %371 = vmatprep.subr.bf16.mxu0 0
    %372 = vmatpush1.bf16.xpose.msra.mxu0 0
    %373 = vmatprep.subr.bf16.mxu0 0
    %374 = vmatpush1.bf16.xpose.msra.mxu0 0
    %375 = vmatprep.subr.bf16.mxu0 0
    %376 = vmatpush1.bf16.xpose.msra.mxu0 0
    %377 = vmatprep.subr.bf16.mxu0 0
    %378 = vmatpush1.bf16.xpose.msra.mxu0 0
    %379 = vmatprep.subr.bf16.mxu0 0
    %380 = vmatpush1.bf16.xpose.msra.mxu0 0
    %381 = vmatprep.subr.bf16.mxu0 0
    %382 = vmatpush1.bf16.xpose.msra.mxu0 0
    %383 = vmatprep.subr.bf16.mxu0 0
    %384 = vmatpush1.bf16.xpose.msra.mxu0 0
    %385 = vmatprep.subr.bf16.mxu0 0
    %386 = vmatpush1.bf16.xpose.msra.mxu0 0
    %387 = vmatprep.subr.bf16.mxu0 0
    %388 = vmatpush1.bf16.xpose.msra.mxu0 0
    %389 = vmatprep.subr.bf16.mxu0 0
    %390 = vmatpush1.bf16.xpose.msra.mxu0 0
    %391 = vmatprep.subr.bf16.mxu0 0
    %392 = vmatpush1.bf16.xpose.msra.mxu0 0
    %393 = vmatprep.subr.bf16.mxu0 0
    %394 = vmatpush1.bf16.xpose.msra.mxu0 0
    %395 = vmatprep.mubr.bf16.mxu0 0
    %396 = vmatmul.mubr.bf16.gmra.mrb[0].mxu0 %v358
    %v397 = vpop.f32.mrb[0].mxu0
    %v398 = vadd.f32 %v156, %v397
    %v399 = vpop.f32.mrb[0].mxu0
    %v400 = vpop.f32.mrb[0].mxu0
    %v401 = vpop.f32.mrb[0].mxu0
    %402 = vdwg.mxu0
    %404 = vrot.lane.b32.xlu0 %v153, 96
    %v405 = vpop.permute.xlu0 %404
    %v407 = vsel %vm160, %v153, 0
    %v410 = vsel %vm160, %v405, 0
    %412 = vmatprep.subr.bf16.mxu0 0
    %413 = vmatpush1.bf16.xpose.msra.mxu0 %v410
    %414 = vmatprep.subr.bf16.mxu0 0
    %415 = vmatpush1.bf16.xpose.msra.mxu0 0
    %416 = vmatprep.subr.bf16.mxu0 0
    %417 = vmatpush1.bf16.xpose.msra.mxu0 0
    %418 = vmatprep.subr.bf16.mxu0 0
    %419 = vmatpush1.bf16.xpose.msra.mxu0 0
    %420 = vmatprep.subr.bf16.mxu0 0
    %421 = vmatpush1.bf16.xpose.msra.mxu0 0
    %422 = vmatprep.subr.bf16.mxu0 0
    %423 = vmatpush1.bf16.xpose.msra.mxu0 0
    %424 = vmatprep.subr.bf16.mxu0 0
    %425 = vmatpush1.bf16.xpose.msra.mxu0 0
    %426 = vmatprep.subr.bf16.mxu0 0
    %427 = vmatpush1.bf16.xpose.msra.mxu0 0
    %428 = vmatprep.subr.bf16.mxu0 0
    %429 = vmatpush1.bf16.xpose.msra.mxu0 0
    %430 = vmatprep.subr.bf16.mxu0 0
    %431 = vmatpush1.bf16.xpose.msra.mxu0 0
    %432 = vmatprep.subr.bf16.mxu0 0
    %433 = vmatpush1.bf16.xpose.msra.mxu0 0
    %434 = vmatprep.subr.bf16.mxu0 0
    %435 = vmatpush1.bf16.xpose.msra.mxu0 0
    %436 = vmatprep.subr.bf16.mxu0 0
    %437 = vmatpush1.bf16.xpose.msra.mxu0 0
    %438 = vmatprep.subr.bf16.mxu0 0
    %439 = vmatpush1.bf16.xpose.msra.mxu0 0
    %440 = vmatprep.subr.bf16.mxu0 0
    %441 = vmatpush1.bf16.xpose.msra.mxu0 0
    %442 = vmatprep.subr.bf16.mxu0 0
    %443 = vmatpush1.bf16.xpose.msra.mxu0 0
    %444 = vmatprep.mubr.bf16.mxu0 0
    %445 = vmatmul.mubr.bf16.gmra.mrb[0].mxu0 %v407
    %v446 = vpop.f32.mrb[0].mxu0
    %v447 = vadd.f32 %v156, %v446
    %v448 = vpop.f32.mrb[0].mxu0
    %v449 = vpop.f32.mrb[0].mxu0
    %v450 = vpop.f32.mrb[0].mxu0
    %451 = vdwg.mxu0
    %453 = vrot.lane.b32.xlu0 %v154, 96
    %v454 = vpop.permute.xlu0 %453
    %v456 = vsel %vm160, %v154, 0
    %v459 = vsel %vm160, %v454, 0
    %461 = vmatprep.subr.bf16.mxu0 0
    %462 = vmatpush1.bf16.xpose.msra.mxu0 %v459
    %463 = vmatprep.subr.bf16.mxu0 0
    %464 = vmatpush1.bf16.xpose.msra.mxu0 0
    %465 = vmatprep.subr.bf16.mxu0 0
    %466 = vmatpush1.bf16.xpose.msra.mxu0 0
    %467 = vmatprep.subr.bf16.mxu0 0
    %468 = vmatpush1.bf16.xpose.msra.mxu0 0
    %469 = vmatprep.subr.bf16.mxu0 0
    %470 = vmatpush1.bf16.xpose.msra.mxu0 0
    %471 = vmatprep.subr.bf16.mxu0 0
    %472 = vmatpush1.bf16.xpose.msra.mxu0 0
    %473 = vmatprep.subr.bf16.mxu0 0
    %474 = vmatpush1.bf16.xpose.msra.mxu0 0
    %475 = vmatprep.subr.bf16.mxu0 0
    %476 = vmatpush1.bf16.xpose.msra.mxu0 0
    %477 = vmatprep.subr.bf16.mxu0 0
    %478 = vmatpush1.bf16.xpose.msra.mxu0 0
    %479 = vmatprep.subr.bf16.mxu0 0
    %480 = vmatpush1.bf16.xpose.msra.mxu0 0
    %481 = vmatprep.subr.bf16.mxu0 0
    %482 = vmatpush1.bf16.xpose.msra.mxu0 0
    %483 = vmatprep.subr.bf16.mxu0 0
    %484 = vmatpush1.bf16.xpose.msra.mxu0 0
    %485 = vmatprep.subr.bf16.mxu0 0
    %486 = vmatpush1.bf16.xpose.msra.mxu0 0
    %487 = vmatprep.subr.bf16.mxu0 0
    %488 = vmatpush1.bf16.xpose.msra.mxu0 0
    %489 = vmatprep.subr.bf16.mxu0 0
    %490 = vmatpush1.bf16.xpose.msra.mxu0 0
    %491 = vmatprep.subr.bf16.mxu0 0
    %492 = vmatpush1.bf16.xpose.msra.mxu0 0
    %493 = vmatprep.mubr.bf16.mxu0 0
    %494 = vmatmul.mubr.bf16.gmra.mrb[0].mxu0 %v456
    %v495 = vpop.f32.mrb[0].mxu0
    %v496 = vadd.f32 %v156, %v495
    %v497 = vpop.f32.mrb[0].mxu0
    %v498 = vpop.f32.mrb[0].mxu0
    %v499 = vpop.f32.mrb[0].mxu0
    %500 = vdwg.mxu0
    %502 = vrot.lane.b32.xlu0 %v155, 96
    %v503 = vpop.permute.xlu0 %502
    %v505 = vsel %vm160, %v155, 0
    %v508 = vsel %vm160, %v503, 0
    %510 = vmatprep.subr.bf16.mxu0 0
    %511 = vmatpush1.bf16.xpose.msra.mxu0 %v508
    %512 = vmatprep.subr.bf16.mxu0 0
    %513 = vmatpush1.bf16.xpose.msra.mxu0 0
    %514 = vmatprep.subr.bf16.mxu0 0
    %515 = vmatpush1.bf16.xpose.msra.mxu0 0
    %516 = vmatprep.subr.bf16.mxu0 0
    %517 = vmatpush1.bf16.xpose.msra.mxu0 0
    %518 = vmatprep.subr.bf16.mxu0 0
    %519 = vmatpush1.bf16.xpose.msra.mxu0 0
    %520 = vmatprep.subr.bf16.mxu0 0
    %521 = vmatpush1.bf16.xpose.msra.mxu0 0
    %522 = vmatprep.subr.bf16.mxu0 0
    %523 = vmatpush1.bf16.xpose.msra.mxu0 0
    %524 = vmatprep.subr.bf16.mxu0 0
    %525 = vmatpush1.bf16.xpose.msra.mxu0 0
    %526 = vmatprep.subr.bf16.mxu0 0
    %527 = vmatpush1.bf16.xpose.msra.mxu0 0
    %528 = vmatprep.subr.bf16.mxu0 0
    %529 = vmatpush1.bf16.xpose.msra.mxu0 0
    %530 = vmatprep.subr.bf16.mxu0 0
    %531 = vmatpush1.bf16.xpose.msra.mxu0 0
    %532 = vmatprep.subr.bf16.mxu0 0
    %533 = vmatpush1.bf16.xpose.msra.mxu0 0
    %534 = vmatprep.subr.bf16.mxu0 0
    %535 = vmatpush1.bf16.xpose.msra.mxu0 0
    %536 = vmatprep.subr.bf16.mxu0 0
    %537 = vmatpush1.bf16.xpose.msra.mxu0 0
    %538 = vmatprep.subr.bf16.mxu0 0
    %539 = vmatpush1.bf16.xpose.msra.mxu0 0
    %540 = vmatprep.subr.bf16.mxu0 0
    %541 = vmatpush1.bf16.xpose.msra.mxu0 0
    %542 = vmatprep.mubr.bf16.mxu0 0
    %543 = vmatmul.mubr.bf16.gmra.mrb[0].mxu0 %v505
    %v544 = vpop.f32.mrb[0].mxu0
    %v545 = vadd.f32 %v156, %v544
    %v546 = vpop.f32.mrb[0].mxu0
    %v547 = vpop.f32.mrb[0].mxu0
    %v548 = vpop.f32.mrb[0].mxu0
    %549 = vdwg.mxu0
    %v550 = vsel %vm160, %v202, -inf
    %551 = vmax.xlane.f32.xlu0 %v550
    %v552 = vpop.xlane.xlu0 %551
    %v553 = vsel %vm160, %v251, -inf
    %554 = vmax.xlane.f32.xlu0 %v553
    %v555 = vpop.xlane.xlu0 %554
    %v556 = vsel %vm160, %v300, -inf
    %557 = vmax.xlane.f32.xlu0 %v556
    %v558 = vpop.xlane.xlu0 %557
    %v559 = vsel %vm160, %v349, -inf
    %560 = vmax.xlane.f32.xlu0 %v559
    %v561 = vpop.xlane.xlu0 %560
    %v562 = vsel %vm160, %v398, -inf
    %563 = vmax.xlane.f32.xlu0 %v562
    %v564 = vpop.xlane.xlu0 %563
    %v565 = vsel %vm160, %v447, -inf
    %566 = vmax.xlane.f32.xlu0 %v565
    %v567 = vpop.xlane.xlu0 %566
    %v568 = vsel %vm160, %v496, -inf
    %569 = vmax.xlane.f32.xlu0 %v568
    %v570 = vpop.xlane.xlu0 %569
    %v571 = vsel %vm160, %v545, -inf
    %572 = vmax.xlane.f32.xlu0 %v571
    %v573 = vpop.xlane.xlu0 %572
    %v574 = vsub.f32 %v202, %v552
    %v575 = vsub.f32 %v251, %v555
    %v576 = vsub.f32 %v300, %v558
    %v577 = vsub.f32 %v349, %v561
    %v578 = vsub.f32 %v398, %v564
    %v579 = vsub.f32 %v447, %v567
    %v580 = vsub.f32 %v496, %v570
    %v581 = vsub.f32 %v545, %v573
    %v582 = vmul.f32 %v574, 1.442695
    %v583 = vpow.pop %v582
    %v584 = vmul.f32 %v575, 1.442695
    %v585 = vpow.pop %v584
    %v586 = vmul.f32 %v576, 1.442695
    %v587 = vpow.pop %v586
    %v588 = vmul.f32 %v577, 1.442695
    %v589 = vpow.pop %v588
    %v590 = vmul.f32 %v578, 1.442695
    %v591 = vpow.pop %v590
    %v592 = vmul.f32 %v579, 1.442695
    %v593 = vpow.pop %v592
    %v594 = vmul.f32 %v580, 1.442695
    %v595 = vpow.pop %v594
    %v596 = vmul.f32 %v581, 1.442695
    %v597 = vpow.pop %v596
    %v598 = vsel %vm160, %v583, 0.0
    %599 = vadd.xlane.f32.xlu0 %v598
    %v600 = vpop.xlane.xlu0 %599
    %v601 = vsel %vm160, %v585, 0.0
    %602 = vadd.xlane.f32.xlu0 %v601
    %v603 = vpop.xlane.xlu0 %602
    %v604 = vsel %vm160, %v587, 0.0
    %605 = vadd.xlane.f32.xlu0 %v604
    %v606 = vpop.xlane.xlu0 %605
    %v607 = vsel %vm160, %v589, 0.0
    %608 = vadd.xlane.f32.xlu0 %v607
    %v609 = vpop.xlane.xlu0 %608
    %v610 = vsel %vm160, %v591, 0.0
    %611 = vadd.xlane.f32.xlu0 %v610
    %v612 = vpop.xlane.xlu0 %611
    %v613 = vsel %vm160, %v593, 0.0
    %614 = vadd.xlane.f32.xlu0 %v613
    %v615 = vpop.xlane.xlu0 %614
    %v616 = vsel %vm160, %v595, 0.0
    %617 = vadd.xlane.f32.xlu0 %v616
    %v618 = vpop.xlane.xlu0 %617
    %v619 = vsel %vm160, %v597, 0.0
    %620 = vadd.xlane.f32.xlu0 %v619
    %v621 = vpop.xlane.xlu0 %620
    %v622 = vrcp.pop %v600
    %v623 = vrcp.pop %v603
    %v624 = vrcp.pop %v606
    %v625 = vrcp.pop %v609
    %v626 = vrcp.pop %v612
    %v627 = vrcp.pop %v615
    %v628 = vrcp.pop %v618
    %v629 = vrcp.pop %v621
    %v630 = vmul.f32 %v583, %v622
    %v631 = vmul.f32 %v585, %v623
    %v632 = vmul.f32 %v587, %v624
    %v633 = vmul.f32 %v589, %v625
    %v634 = vmul.f32 %v591, %v626
    %v635 = vmul.f32 %v593, %v627
    %v636 = vmul.f32 %v595, %v628
    %v637 = vmul.f32 %v597, %v629
    %v638 = vpack.c.bf16 %v630, %v630
    %v639 = vpack.c.bf16 %v631, %v631
    %v640 = vpack.c.bf16 %v632, %v632
    %v641 = vpack.c.bf16 %v633, %v633
    %v642 = vpack.c.bf16 %v634, %v634
    %v643 = vpack.c.bf16 %v635, %v635
    %v644 = vpack.c.bf16 %v636, %v636
    %v645 = vpack.c.bf16 %v637, %v637
    %646 = vrot.lane.b32.xlu0 %v148, 64
    %v647 = vpop.permute.xlu0 %646
    %v649 = vsel %vm160, %v638, 0
    %vm651 = vcmask 1043456
    %v653 = vsel %vm651, %v647, 0
    %655 = vmatprep.subr.bf16.mxu0 0
    %656 = vmatpush1.bf16.msra.mxu0 %v653
    %657 = vmatprep.subr.bf16.mxu0 0
    %658 = vmatpush1.bf16.msra.mxu0 0
    %659 = vmatprep.subr.bf16.mxu0 0
    %660 = vmatpush1.bf16.msra.mxu0 0
    %661 = vmatprep.subr.bf16.mxu0 0
    %662 = vmatpush1.bf16.msra.mxu0 0
    %663 = vmatprep.subr.bf16.mxu0 0
    %664 = vmatpush1.bf16.msra.mxu0 0
    %665 = vmatprep.subr.bf16.mxu0 0
    %666 = vmatpush1.bf16.msra.mxu0 0
    %667 = vmatprep.subr.bf16.mxu0 0
    %668 = vmatpush1.bf16.msra.mxu0 0
    %669 = vmatprep.subr.bf16.mxu0 0
    %670 = vmatpush1.bf16.msra.mxu0 0
    %671 = vmatprep.subr.bf16.mxu0 0
    %672 = vmatpush1.bf16.msra.mxu0 0
    %673 = vmatprep.subr.bf16.mxu0 0
    %674 = vmatpush1.bf16.msra.mxu0 0
    %675 = vmatprep.subr.bf16.mxu0 0
    %676 = vmatpush1.bf16.msra.mxu0 0
    %677 = vmatprep.subr.bf16.mxu0 0
    %678 = vmatpush1.bf16.msra.mxu0 0
    %679 = vmatprep.subr.bf16.mxu0 0
    %680 = vmatpush1.bf16.msra.mxu0 0
    %681 = vmatprep.subr.bf16.mxu0 0
    %682 = vmatpush1.bf16.msra.mxu0 0
    %683 = vmatprep.subr.bf16.mxu0 0
    %684 = vmatpush1.bf16.msra.mxu0 0
    %685 = vmatprep.subr.bf16.mxu0 0
    %686 = vmatpush1.bf16.msra.mxu0 0
    %687 = vmatprep.mubr.bf16.mxu0 0
    %688 = vmatmul.mubr.bf16.gmra.mrb[0].mxu0 %v649
    %v689 = vpop.f32.mrb[0].mxu0
    %v690 = vadd.f32 0.0, %v689
    %v691 = vpop.f32.mrb[0].mxu0
    %v692 = vpop.f32.mrb[0].mxu0
    %v693 = vpop.f32.mrb[0].mxu0
    %694 = vdwg.mxu0
    %695 = vrot.lane.b32.xlu0 %v149, 64
    %v696 = vpop.permute.xlu0 %695
    %v698 = vsel %vm160, %v639, 0
    %v701 = vsel %vm651, %v696, 0
    %703 = vmatprep.subr.bf16.mxu0 0
    %704 = vmatpush1.bf16.msra.mxu0 %v701
    %705 = vmatprep.subr.bf16.mxu0 0
    %706 = vmatpush1.bf16.msra.mxu0 0
    %707 = vmatprep.subr.bf16.mxu0 0
    %708 = vmatpush1.bf16.msra.mxu0 0
    %709 = vmatprep.subr.bf16.mxu0 0
    %710 = vmatpush1.bf16.msra.mxu0 0
    %711 = vmatprep.subr.bf16.mxu0 0
    %712 = vmatpush1.bf16.msra.mxu0 0
    %713 = vmatprep.subr.bf16.mxu0 0
    %714 = vmatpush1.bf16.msra.mxu0 0
    %715 = vmatprep.subr.bf16.mxu0 0
    %716 = vmatpush1.bf16.msra.mxu0 0
    %717 = vmatprep.subr.bf16.mxu0 0
    %718 = vmatpush1.bf16.msra.mxu0 0
    %719 = vmatprep.subr.bf16.mxu0 0
    %720 = vmatpush1.bf16.msra.mxu0 0
    %721 = vmatprep.subr.bf16.mxu0 0
    %722 = vmatpush1.bf16.msra.mxu0 0
    %723 = vmatprep.subr.bf16.mxu0 0
    %724 = vmatpush1.bf16.msra.mxu0 0
    %725 = vmatprep.subr.bf16.mxu0 0
    %726 = vmatpush1.bf16.msra.mxu0 0
    %727 = vmatprep.subr.bf16.mxu0 0
    %728 = vmatpush1.bf16.msra.mxu0 0
    %729 = vmatprep.subr.bf16.mxu0 0
    %730 = vmatpush1.bf16.msra.mxu0 0
    %731 = vmatprep.subr.bf16.mxu0 0
    %732 = vmatpush1.bf16.msra.mxu0 0
    %733 = vmatprep.subr.bf16.mxu0 0
    %734 = vmatpush1.bf16.msra.mxu0 0
    %735 = vmatprep.mubr.bf16.mxu0 0
    %736 = vmatmul.mubr.bf16.gmra.mrb[0].mxu0 %v698
    %v737 = vpop.f32.mrb[0].mxu0
    %v738 = vadd.f32 0.0, %v737
    %v739 = vpop.f32.mrb[0].mxu0
    %v740 = vpop.f32.mrb[0].mxu0
    %v741 = vpop.f32.mrb[0].mxu0
    %742 = vdwg.mxu0
    %743 = vrot.lane.b32.xlu0 %v150, 64
    %v744 = vpop.permute.xlu0 %743
    %v746 = vsel %vm160, %v640, 0
    %v749 = vsel %vm651, %v744, 0
    %751 = vmatprep.subr.bf16.mxu0 0
    %752 = vmatpush1.bf16.msra.mxu0 %v749
    %753 = vmatprep.subr.bf16.mxu0 0
    %754 = vmatpush1.bf16.msra.mxu0 0
    %755 = vmatprep.subr.bf16.mxu0 0
    %756 = vmatpush1.bf16.msra.mxu0 0
    %757 = vmatprep.subr.bf16.mxu0 0
    %758 = vmatpush1.bf16.msra.mxu0 0
    %759 = vmatprep.subr.bf16.mxu0 0
    %760 = vmatpush1.bf16.msra.mxu0 0
    %761 = vmatprep.subr.bf16.mxu0 0
    %762 = vmatpush1.bf16.msra.mxu0 0
    %763 = vmatprep.subr.bf16.mxu0 0
    %764 = vmatpush1.bf16.msra.mxu0 0
    %765 = vmatprep.subr.bf16.mxu0 0
    %766 = vmatpush1.bf16.msra.mxu0 0
    %767 = vmatprep.subr.bf16.mxu0 0
    %768 = vmatpush1.bf16.msra.mxu0 0
    %769 = vmatprep.subr.bf16.mxu0 0
    %770 = vmatpush1.bf16.msra.mxu0 0
    %771 = vmatprep.subr.bf16.mxu0 0
    %772 = vmatpush1.bf16.msra.mxu0 0
    %773 = vmatprep.subr.bf16.mxu0 0
    %774 = vmatpush1.bf16.msra.mxu0 0
    %775 = vmatprep.subr.bf16.mxu0 0
    %776 = vmatpush1.bf16.msra.mxu0 0
    %777 = vmatprep.subr.bf16.mxu0 0
    %778 = vmatpush1.bf16.msra.mxu0 0
    %779 = vmatprep.subr.bf16.mxu0 0
    %780 = vmatpush1.bf16.msra.mxu0 0
    %781 = vmatprep.subr.bf16.mxu0 0
    %782 = vmatpush1.bf16.msra.mxu0 0
    %783 = vmatprep.mubr.bf16.mxu0 0
    %784 = vmatmul.mubr.bf16.gmra.mrb[0].mxu0 %v746
    %v785 = vpop.f32.mrb[0].mxu0
    %v786 = vadd.f32 0.0, %v785
    %v787 = vpop.f32.mrb[0].mxu0
    %v788 = vpop.f32.mrb[0].mxu0
    %v789 = vpop.f32.mrb[0].mxu0
    %790 = vdwg.mxu0
    %791 = vrot.lane.b32.xlu0 %v151, 64
    %v792 = vpop.permute.xlu0 %791
    %v794 = vsel %vm160, %v641, 0
    %v797 = vsel %vm651, %v792, 0
    %799 = vmatprep.subr.bf16.mxu0 0
    %800 = vmatpush1.bf16.msra.mxu0 %v797
    %801 = vmatprep.subr.bf16.mxu0 0
    %802 = vmatpush1.bf16.msra.mxu0 0
    %803 = vmatprep.subr.bf16.mxu0 0
    %804 = vmatpush1.bf16.msra.mxu0 0
    %805 = vmatprep.subr.bf16.mxu0 0
    %806 = vmatpush1.bf16.msra.mxu0 0
    %807 = vmatprep.subr.bf16.mxu0 0
    %808 = vmatpush1.bf16.msra.mxu0 0
    %809 = vmatprep.subr.bf16.mxu0 0
    %810 = vmatpush1.bf16.msra.mxu0 0
    %811 = vmatprep.subr.bf16.mxu0 0
    %812 = vmatpush1.bf16.msra.mxu0 0
    %813 = vmatprep.subr.bf16.mxu0 0
    %814 = vmatpush1.bf16.msra.mxu0 0
    %815 = vmatprep.subr.bf16.mxu0 0
    %816 = vmatpush1.bf16.msra.mxu0 0
    %817 = vmatprep.subr.bf16.mxu0 0
    %818 = vmatpush1.bf16.msra.mxu0 0
    %819 = vmatprep.subr.bf16.mxu0 0
    %820 = vmatpush1.bf16.msra.mxu0 0
    %821 = vmatprep.subr.bf16.mxu0 0
    %822 = vmatpush1.bf16.msra.mxu0 0
    %823 = vmatprep.subr.bf16.mxu0 0
    %824 = vmatpush1.bf16.msra.mxu0 0
    %825 = vmatprep.subr.bf16.mxu0 0
    %826 = vmatpush1.bf16.msra.mxu0 0
    %827 = vmatprep.subr.bf16.mxu0 0
    %828 = vmatpush1.bf16.msra.mxu0 0
    %829 = vmatprep.subr.bf16.mxu0 0
    %830 = vmatpush1.bf16.msra.mxu0 0
    %831 = vmatprep.mubr.bf16.mxu0 0
    %832 = vmatmul.mubr.bf16.gmra.mrb[0].mxu0 %v794
    %v833 = vpop.f32.mrb[0].mxu0
    %v834 = vadd.f32 0.0, %v833
    %v835 = vpop.f32.mrb[0].mxu0
    %v836 = vpop.f32.mrb[0].mxu0
    %v837 = vpop.f32.mrb[0].mxu0
    %838 = vdwg.mxu0
    %839 = vrot.lane.b32.xlu0 %v152, 64
    %v840 = vpop.permute.xlu0 %839
    %v842 = vsel %vm160, %v642, 0
    %v845 = vsel %vm651, %v840, 0
    %847 = vmatprep.subr.bf16.mxu0 0
    %848 = vmatpush1.bf16.msra.mxu0 %v845
    %849 = vmatprep.subr.bf16.mxu0 0
    %850 = vmatpush1.bf16.msra.mxu0 0
    %851 = vmatprep.subr.bf16.mxu0 0
    %852 = vmatpush1.bf16.msra.mxu0 0
    %853 = vmatprep.subr.bf16.mxu0 0
    %854 = vmatpush1.bf16.msra.mxu0 0
    %855 = vmatprep.subr.bf16.mxu0 0
    %856 = vmatpush1.bf16.msra.mxu0 0
    %857 = vmatprep.subr.bf16.mxu0 0
    %858 = vmatpush1.bf16.msra.mxu0 0
    %859 = vmatprep.subr.bf16.mxu0 0
    %860 = vmatpush1.bf16.msra.mxu0 0
    %861 = vmatprep.subr.bf16.mxu0 0
    %862 = vmatpush1.bf16.msra.mxu0 0
    %863 = vmatprep.subr.bf16.mxu0 0
    %864 = vmatpush1.bf16.msra.mxu0 0
    %865 = vmatprep.subr.bf16.mxu0 0
    %866 = vmatpush1.bf16.msra.mxu0 0
    %867 = vmatprep.subr.bf16.mxu0 0
    %868 = vmatpush1.bf16.msra.mxu0 0
    %869 = vmatprep.subr.bf16.mxu0 0
    %870 = vmatpush1.bf16.msra.mxu0 0
    %871 = vmatprep.subr.bf16.mxu0 0
    %872 = vmatpush1.bf16.msra.mxu0 0
    %873 = vmatprep.subr.bf16.mxu0 0
    %874 = vmatpush1.bf16.msra.mxu0 0
    %875 = vmatprep.subr.bf16.mxu0 0
    %876 = vmatpush1.bf16.msra.mxu0 0
    %877 = vmatprep.subr.bf16.mxu0 0
    %878 = vmatpush1.bf16.msra.mxu0 0
    %879 = vmatprep.mubr.bf16.mxu0 0
    %880 = vmatmul.mubr.bf16.gmra.mrb[0].mxu0 %v842
    %v881 = vpop.f32.mrb[0].mxu0
    %v882 = vadd.f32 0.0, %v881
    %v883 = vpop.f32.mrb[0].mxu0
    %v884 = vpop.f32.mrb[0].mxu0
    %v885 = vpop.f32.mrb[0].mxu0
    %886 = vdwg.mxu0
    %887 = vrot.lane.b32.xlu0 %v153, 64
    %v888 = vpop.permute.xlu0 %887
    %v890 = vsel %vm160, %v643, 0
    %v893 = vsel %vm651, %v888, 0
    %895 = vmatprep.subr.bf16.mxu0 0
    %896 = vmatpush1.bf16.msra.mxu0 %v893
    %897 = vmatprep.subr.bf16.mxu0 0
    %898 = vmatpush1.bf16.msra.mxu0 0
    %899 = vmatprep.subr.bf16.mxu0 0
    %900 = vmatpush1.bf16.msra.mxu0 0
    %901 = vmatprep.subr.bf16.mxu0 0
    %902 = vmatpush1.bf16.msra.mxu0 0
    %903 = vmatprep.subr.bf16.mxu0 0
    %904 = vmatpush1.bf16.msra.mxu0 0
    %905 = vmatprep.subr.bf16.mxu0 0
    %906 = vmatpush1.bf16.msra.mxu0 0
    %907 = vmatprep.subr.bf16.mxu0 0
    %908 = vmatpush1.bf16.msra.mxu0 0
    %909 = vmatprep.subr.bf16.mxu0 0
    %910 = vmatpush1.bf16.msra.mxu0 0
    %911 = vmatprep.subr.bf16.mxu0 0
    %912 = vmatpush1.bf16.msra.mxu0 0
    %913 = vmatprep.subr.bf16.mxu0 0
    %914 = vmatpush1.bf16.msra.mxu0 0
    %915 = vmatprep.subr.bf16.mxu0 0
    %916 = vmatpush1.bf16.msra.mxu0 0
    %917 = vmatprep.subr.bf16.mxu0 0
    %918 = vmatpush1.bf16.msra.mxu0 0
    %919 = vmatprep.subr.bf16.mxu0 0
    %920 = vmatpush1.bf16.msra.mxu0 0
    %921 = vmatprep.subr.bf16.mxu0 0
    %922 = vmatpush1.bf16.msra.mxu0 0
    %923 = vmatprep.subr.bf16.mxu0 0
    %924 = vmatpush1.bf16.msra.mxu0 0
    %925 = vmatprep.subr.bf16.mxu0 0
    %926 = vmatpush1.bf16.msra.mxu0 0
    %927 = vmatprep.mubr.bf16.mxu0 0
    %928 = vmatmul.mubr.bf16.gmra.mrb[0].mxu0 %v890
    %v929 = vpop.f32.mrb[0].mxu0
    %v930 = vadd.f32 0.0, %v929
    %v931 = vpop.f32.mrb[0].mxu0
    %v932 = vpop.f32.mrb[0].mxu0
    %v933 = vpop.f32.mrb[0].mxu0
    %934 = vdwg.mxu0
    %935 = vrot.lane.b32.xlu0 %v154, 64
    %v936 = vpop.permute.xlu0 %935
    %v938 = vsel %vm160, %v644, 0
    %v941 = vsel %vm651, %v936, 0
    %943 = vmatprep.subr.bf16.mxu0 0
    %944 = vmatpush1.bf16.msra.mxu0 %v941
    %945 = vmatprep.subr.bf16.mxu0 0
    %946 = vmatpush1.bf16.msra.mxu0 0
    %947 = vmatprep.subr.bf16.mxu0 0
    %948 = vmatpush1.bf16.msra.mxu0 0
    %949 = vmatprep.subr.bf16.mxu0 0
    %950 = vmatpush1.bf16.msra.mxu0 0
    %951 = vmatprep.subr.bf16.mxu0 0
    %952 = vmatpush1.bf16.msra.mxu0 0
    %953 = vmatprep.subr.bf16.mxu0 0
    %954 = vmatpush1.bf16.msra.mxu0 0
    %955 = vmatprep.subr.bf16.mxu0 0
    %956 = vmatpush1.bf16.msra.mxu0 0
    %957 = vmatprep.subr.bf16.mxu0 0
    %958 = vmatpush1.bf16.msra.mxu0 0
    %959 = vmatprep.subr.bf16.mxu0 0
    %960 = vmatpush1.bf16.msra.mxu0 0
    %961 = vmatprep.subr.bf16.mxu0 0
    %962 = vmatpush1.bf16.msra.mxu0 0
    %963 = vmatprep.subr.bf16.mxu0 0
    %964 = vmatpush1.bf16.msra.mxu0 0
    %965 = vmatprep.subr.bf16.mxu0 0
    %966 = vmatpush1.bf16.msra.mxu0 0
    %967 = vmatprep.subr.bf16.mxu0 0
    %968 = vmatpush1.bf16.msra.mxu0 0
    %969 = vmatprep.subr.bf16.mxu0 0
    %970 = vmatpush1.bf16.msra.mxu0 0
    %971 = vmatprep.subr.bf16.mxu0 0
    %972 = vmatpush1.bf16.msra.mxu0 0
    %973 = vmatprep.subr.bf16.mxu0 0
    %974 = vmatpush1.bf16.msra.mxu0 0
    %975 = vmatprep.mubr.bf16.mxu0 0
    %976 = vmatmul.mubr.bf16.gmra.mrb[0].mxu0 %v938
    %v977 = vpop.f32.mrb[0].mxu0
    %v978 = vadd.f32 0.0, %v977
    %v979 = vpop.f32.mrb[0].mxu0
    %v980 = vpop.f32.mrb[0].mxu0
    %v981 = vpop.f32.mrb[0].mxu0
    %982 = vdwg.mxu0
    %983 = vrot.lane.b32.xlu0 %v155, 64
    %v984 = vpop.permute.xlu0 %983
    %v986 = vsel %vm160, %v645, 0
    %v989 = vsel %vm651, %v984, 0
    %991 = vmatprep.subr.bf16.mxu0 0
    %992 = vmatpush1.bf16.msra.mxu0 %v989
    %993 = vmatprep.subr.bf16.mxu0 0
    %994 = vmatpush1.bf16.msra.mxu0 0
    %995 = vmatprep.subr.bf16.mxu0 0
    %996 = vmatpush1.bf16.msra.mxu0 0
    %997 = vmatprep.subr.bf16.mxu0 0
    %998 = vmatpush1.bf16.msra.mxu0 0
    %999 = vmatprep.subr.bf16.mxu0 0
    %1000 = vmatpush1.bf16.msra.mxu0 0
    %1001 = vmatprep.subr.bf16.mxu0 0
    %1002 = vmatpush1.bf16.msra.mxu0 0
    %1003 = vmatprep.subr.bf16.mxu0 0
    %1004 = vmatpush1.bf16.msra.mxu0 0
    %1005 = vmatprep.subr.bf16.mxu0 0
    %1006 = vmatpush1.bf16.msra.mxu0 0
    %1007 = vmatprep.subr.bf16.mxu0 0
    %1008 = vmatpush1.bf16.msra.mxu0 0
    %1009 = vmatprep.subr.bf16.mxu0 0
    %1010 = vmatpush1.bf16.msra.mxu0 0
    %1011 = vmatprep.subr.bf16.mxu0 0
    %1012 = vmatpush1.bf16.msra.mxu0 0
    %1013 = vmatprep.subr.bf16.mxu0 0
    %1014 = vmatpush1.bf16.msra.mxu0 0
    %1015 = vmatprep.subr.bf16.mxu0 0
    %1016 = vmatpush1.bf16.msra.mxu0 0
    %1017 = vmatprep.subr.bf16.mxu0 0
    %1018 = vmatpush1.bf16.msra.mxu0 0
    %1019 = vmatprep.subr.bf16.mxu0 0
    %1020 = vmatpush1.bf16.msra.mxu0 0
    %1021 = vmatprep.subr.bf16.mxu0 0
    %1022 = vmatpush1.bf16.msra.mxu0 0
    %1023 = vmatprep.mubr.bf16.mxu0 0
    %1024 = vmatmul.mubr.bf16.gmra.mrb[0].mxu0 %v986
    %v1025 = vpop.f32.mrb[0].mxu0
    %v1026 = vadd.f32 0.0, %v1025
    %v1027 = vpop.f32.mrb[0].mxu0
    %v1028 = vpop.f32.mrb[0].mxu0
    %v1029 = vpop.f32.mrb[0].mxu0
    %1030 = vdwg.mxu0
    %v1031 = vpack.c.bf16 %v690, %v690
    %v1032 = vpack.c.bf16 %v738, %v738
    %v1033 = vpack.c.bf16 %v786, %v786
    %v1034 = vpack.c.bf16 %v834, %v834
    %v1035 = vpack.c.bf16 %v882, %v882
    %v1036 = vpack.c.bf16 %v930, %v930
    %v1037 = vpack.c.bf16 %v978, %v978
    %v1038 = vpack.c.bf16 %v1026, %v1026
    %v1039 = vld [vmem:[#allocation7] sm:$0xf]
    %v1040 = vld [vmem:[#allocation7 + $0x4] sm:$0xf]
    %v1041 = vld [vmem:[#allocation7 + $0x8] sm:$0xf]
    %v1042 = vld [vmem:[#allocation7 + $0xc] sm:$0xf]
    %v1045 = vunpack.c.l.b16 %v1033
    %v1046 = vunpack.c.l.b16 %v1034
    %v1047 = vpack.c.b16 %v1046, %v1045
    %v1049 = vsel %vm160, %v1047, 0
    %v1052 = vsel %vm651, %v1040, 0
    %1054 = vmatprep.subr.bf16.mxu0 0
    %1055 = vmatpush1.bf16.msra.mxu0 %v1052
    %1056 = vmatprep.subr.bf16.mxu0 0
    %1057 = vmatpush1.bf16.msra.mxu0 0
    %1058 = vmatprep.subr.bf16.mxu0 0
    %1059 = vmatpush1.bf16.msra.mxu0 0
    %1060 = vmatprep.subr.bf16.mxu0 0
    %1061 = vmatpush1.bf16.msra.mxu0 0
    %1062 = vmatprep.subr.bf16.mxu0 0
    %1063 = vmatpush1.bf16.msra.mxu0 0
    %1064 = vmatprep.subr.bf16.mxu0 0
    %1065 = vmatpush1.bf16.msra.mxu0 0
    %1066 = vmatprep.subr.bf16.mxu0 0
    %1067 = vmatpush1.bf16.msra.mxu0 0
    %1068 = vmatprep.subr.bf16.mxu0 0
    %1069 = vmatpush1.bf16.msra.mxu0 0
    %1070 = vmatprep.subr.bf16.mxu0 0
    %1071 = vmatpush1.bf16.msra.mxu0 0
    %1072 = vmatprep.subr.bf16.mxu0 0
    %1073 = vmatpush1.bf16.msra.mxu0 0
    %1074 = vmatprep.subr.bf16.mxu0 0
    %1075 = vmatpush1.bf16.msra.mxu0 0
    %1076 = vmatprep.subr.bf16.mxu0 0
    %1077 = vmatpush1.bf16.msra.mxu0 0
    %1078 = vmatprep.subr.bf16.mxu0 0
    %1079 = vmatpush1.bf16.msra.mxu0 0
    %1080 = vmatprep.subr.bf16.mxu0 0
    %1081 = vmatpush1.bf16.msra.mxu0 0
    %1082 = vmatprep.subr.bf16.mxu0 0
    %1083 = vmatpush1.bf16.msra.mxu0 0
    %1084 = vmatprep.subr.bf16.mxu0 0
    %1085 = vmatpush1.bf16.msra.mxu0 0
    %1086 = vmatprep.mubr.bf16.mxu0 0
    %1087 = vmatmul.mubr.bf16.gmra.mrb[0].mxu0 %v1049
    %v1088 = vpop.f32.mrb[0].mxu0
    %v1089 = vadd.f32 0.0, %v1088
    %v1090 = vpop.f32.mrb[0].mxu0
    %v1091 = vpop.f32.mrb[0].mxu0
    %v1092 = vadd.f32 0.0, %v1091
    %v1093 = vpop.f32.mrb[0].mxu0
    %1094 = vdwg.mxu0
    %v1097 = vunpack.c.l.b16 %v1031
    %v1098 = vunpack.c.l.b16 %v1032
    %v1099 = vpack.c.b16 %v1098, %v1097
    %v1101 = vsel %vm160, %v1099, 0
    %v1104 = vsel %vm651, %v1039, 0
    %1106 = vmatprep.subr.bf16.mxu0 0
    %1107 = vmatpush1.bf16.msra.mxu0 %v1104
    %1108 = vmatprep.subr.bf16.mxu0 0
    %1109 = vmatpush1.bf16.msra.mxu0 0
    %1110 = vmatprep.subr.bf16.mxu0 0
    %1111 = vmatpush1.bf16.msra.mxu0 0
    %1112 = vmatprep.subr.bf16.mxu0 0
    %1113 = vmatpush1.bf16.msra.mxu0 0
    %1114 = vmatprep.subr.bf16.mxu0 0
    %1115 = vmatpush1.bf16.msra.mxu0 0
    %1116 = vmatprep.subr.bf16.mxu0 0
    %1117 = vmatpush1.bf16.msra.mxu0 0
    %1118 = vmatprep.subr.bf16.mxu0 0
    %1119 = vmatpush1.bf16.msra.mxu0 0
    %1120 = vmatprep.subr.bf16.mxu0 0
    %1121 = vmatpush1.bf16.msra.mxu0 0
    %1122 = vmatprep.subr.bf16.mxu0 0
    %1123 = vmatpush1.bf16.msra.mxu0 0
    %1124 = vmatprep.subr.bf16.mxu0 0
    %1125 = vmatpush1.bf16.msra.mxu0 0
    %1126 = vmatprep.subr.bf16.mxu0 0
    %1127 = vmatpush1.bf16.msra.mxu0 0
    %1128 = vmatprep.subr.bf16.mxu0 0
    %1129 = vmatpush1.bf16.msra.mxu0 0
    %1130 = vmatprep.subr.bf16.mxu0 0
    %1131 = vmatpush1.bf16.msra.mxu0 0
    %1132 = vmatprep.subr.bf16.mxu0 0
    %1133 = vmatpush1.bf16.msra.mxu0 0
    %1134 = vmatprep.subr.bf16.mxu0 0
    %1135 = vmatpush1.bf16.msra.mxu0 0
    %1136 = vmatprep.subr.bf16.mxu0 0
    %1137 = vmatpush1.bf16.msra.mxu0 0
    %1138 = vmatprep.mubr.bf16.mxu0 0
    %1139 = vmatmul.mubr.bf16.gmra.mrb[0].mxu0 %v1101
    %v1140 = vpop.f32.mrb[0].mxu0
    %v1141 = vadd.f32 %v1089, %v1140
    %v1142 = vpop.f32.mrb[0].mxu0
    %v1143 = vpop.f32.mrb[0].mxu0
    %v1144 = vadd.f32 %v1092, %v1143
    %v1145 = vpop.f32.mrb[0].mxu0
    %1146 = vdwg.mxu0
    %v1149 = vunpack.c.l.b16 %v1035
    %v1150 = vunpack.c.l.b16 %v1036
    %v1151 = vpack.c.b16 %v1150, %v1149
    %v1153 = vsel %vm160, %v1151, 0
    %v1156 = vsel %vm651, %v1041, 0
    %1158 = vmatprep.subr.bf16.mxu0 0
    %1159 = vmatpush1.bf16.msra.mxu0 %v1156
    %1160 = vmatprep.subr.bf16.mxu0 0
    %1161 = vmatpush1.bf16.msra.mxu0 0
    %1162 = vmatprep.subr.bf16.mxu0 0
    %1163 = vmatpush1.bf16.msra.mxu0 0
    %1164 = vmatprep.subr.bf16.mxu0 0
    %1165 = vmatpush1.bf16.msra.mxu0 0
    %1166 = vmatprep.subr.bf16.mxu0 0
    %1167 = vmatpush1.bf16.msra.mxu0 0
    %1168 = vmatprep.subr.bf16.mxu0 0
    %1169 = vmatpush1.bf16.msra.mxu0 0
    %1170 = vmatprep.subr.bf16.mxu0 0
    %1171 = vmatpush1.bf16.msra.mxu0 0
    %1172 = vmatprep.subr.bf16.mxu0 0
    %1173 = vmatpush1.bf16.msra.mxu0 0
    %1174 = vmatprep.subr.bf16.mxu0 0
    %1175 = vmatpush1.bf16.msra.mxu0 0
    %1176 = vmatprep.subr.bf16.mxu0 0
    %1177 = vmatpush1.bf16.msra.mxu0 0
    %1178 = vmatprep.subr.bf16.mxu0 0
    %1179 = vmatpush1.bf16.msra.mxu0 0
    %1180 = vmatprep.subr.bf16.mxu0 0
    %1181 = vmatpush1.bf16.msra.mxu0 0
    %1182 = vmatprep.subr.bf16.mxu0 0
    %1183 = vmatpush1.bf16.msra.mxu0 0
    %1184 = vmatprep.subr.bf16.mxu0 0
    %1185 = vmatpush1.bf16.msra.mxu0 0
    %1186 = vmatprep.subr.bf16.mxu0 0
    %1187 = vmatpush1.bf16.msra.mxu0 0
    %1188 = vmatprep.subr.bf16.mxu0 0
    %1189 = vmatpush1.bf16.msra.mxu0 0
    %1190 = vmatprep.mubr.bf16.mxu0 0
    %1191 = vmatmul.mubr.bf16.gmra.mrb[0].mxu0 %v1153
    %v1192 = vpop.f32.mrb[0].mxu0
    %v1193 = vadd.f32 0.0, %v1192
    %v1194 = vpop.f32.mrb[0].mxu0
    %v1195 = vpop.f32.mrb[0].mxu0
    %v1196 = vadd.f32 0.0, %v1195
    %v1197 = vpop.f32.mrb[0].mxu0
    %1198 = vdwg.mxu0
    %v1199 = vadd.f32 %v1141, %v1193
    %v1200 = vadd.f32 %v1144, %v1196
    %v1203 = vunpack.c.l.b16 %v1037
    %v1204 = vunpack.c.l.b16 %v1038
    %v1205 = vpack.c.b16 %v1204, %v1203
    %v1207 = vsel %vm160, %v1205, 0
    %v1210 = vsel %vm651, %v1042, 0
    %1212 = vmatprep.subr.bf16.mxu0 0
    %1213 = vmatpush1.bf16.msra.mxu0 %v1210
    %1214 = vmatprep.subr.bf16.mxu0 0
    %1215 = vmatpush1.bf16.msra.mxu0 0
    %1216 = vmatprep.subr.bf16.mxu0 0
    %1217 = vmatpush1.bf16.msra.mxu0 0
    %1218 = vmatprep.subr.bf16.mxu0 0
    %1219 = vmatpush1.bf16.msra.mxu0 0
    %1220 = vmatprep.subr.bf16.mxu0 0
    %1221 = vmatpush1.bf16.msra.mxu0 0
    %1222 = vmatprep.subr.bf16.mxu0 0
    %1223 = vmatpush1.bf16.msra.mxu0 0
    %1224 = vmatprep.subr.bf16.mxu0 0
    %1225 = vmatpush1.bf16.msra.mxu0 0
    %1226 = vmatprep.subr.bf16.mxu0 0
    %1227 = vmatpush1.bf16.msra.mxu0 0
    %1228 = vmatprep.subr.bf16.mxu0 0
    %1229 = vmatpush1.bf16.msra.mxu0 0
    %1230 = vmatprep.subr.bf16.mxu0 0
    %1231 = vmatpush1.bf16.msra.mxu0 0
    %1232 = vmatprep.subr.bf16.mxu0 0
    %1233 = vmatpush1.bf16.msra.mxu0 0
    %1234 = vmatprep.subr.bf16.mxu0 0
    %1235 = vmatpush1.bf16.msra.mxu0 0
    %1236 = vmatprep.subr.bf16.mxu0 0
    %1237 = vmatpush1.bf16.msra.mxu0 0
    %1238 = vmatprep.subr.bf16.mxu0 0
    %1239 = vmatpush1.bf16.msra.mxu0 0
    %1240 = vmatprep.subr.bf16.mxu0 0
    %1241 = vmatpush1.bf16.msra.mxu0 0
    %1242 = vmatprep.subr.bf16.mxu0 0
    %1243 = vmatpush1.bf16.msra.mxu0 0
    %1244 = vmatprep.mubr.bf16.mxu0 0
    %1245 = vmatmul.mubr.bf16.gmra.mrb[0].mxu0 %v1207
    %v1246 = vpop.f32.mrb[0].mxu0
    %v1247 = vadd.f32 0.0, %v1246
    %v1248 = vpop.f32.mrb[0].mxu0
    %v1249 = vpop.f32.mrb[0].mxu0
    %v1250 = vadd.f32 0.0, %v1249
    %v1251 = vpop.f32.mrb[0].mxu0
    %1252 = vdwg.mxu0
    %v1253 = vadd.f32 %v1199, %v1247
    %v1254 = vadd.f32 %v1200, %v1250
    %1255 = vst.msk [vmem:[#allocation8] sm:$0xff] %vm83, %v1253
    %1256 = vst.msk [vmem:[#allocation8 + $0x8] sm:$0xff] %vm83, %v1254
    // Predicated region
    $region30: #{tpu_custom_call.1} parent=1 // pred_check
      _
    $region31: #{tpu_custom_call.1} parent=1 // pred_check_branch
      %1258 = sbr.rel (0) target = $region33
    $region32: #{tpu_custom_call.1} parent=1 // pred_region
      %s1260 = ssub.s32 256, 256
      %1261 = vsyncadd [#allocation4], %s1260
      %s1262 = sshll.u32 [#allocation8], 4
      %s1263 = int_to_ptr.vmem [resolvable:$true] %s1262
      %1268 = dma.vmem_to_hbm [thread:$0]  %s1263, 256, %s4, [#allocation4], 128, 128, 8
    $region33: #{tpu_custom_call.1} parent=1 // pred_fallthru
      _
    // Predicated region
    $region34: #{tpu_custom_call.1} parent=1 // pred_check
      _
    $region35: #{tpu_custom_call.1} parent=1 // pred_check_branch
      %1270 = sbr.rel (0) target = $region37
    $region36: #{tpu_custom_call.1} parent=1 // pred_region
      %1271 = dma.done [#allocation4], 256
    $region37: #{tpu_custom_call.1} parent=1 // pred_fallthru
      _
    %1272 = vsyncpa [#allocation3], 1
    %1273 = vsyncpa [#allocation6], 1
    %1274 = vsyncpa [#allocation4], 1

</llo_original>
